<compile_context>
chip_gen: v5e
topology: v5e:2x2
jax: 0.10.0
libtpu: 0.0.40
codegen_flags: <defaults>
</compile_context>

<pallas_src>
import functools

import jax
import jax.numpy as jnp
from jax.experimental import pallas as pl
from jax.experimental.pallas import tpu as pltpu


_MIN_BLOCK_BYTES = 256 * 1024     # per-input block floor (per-step overhead ~0.35us)
_TARGET_GRID_STEPS = 8            # >=4 steps per TensorCore on v7x megacore
_MAX_REPACK_WIDTH = 4096          # cap for the copy-free (N, C) -> (N/k, k*C) repack

_TRIPLE_BUFFER_OK = True          # flipped off if pl.Buffered(3) fails to lower


def _round_up(x, m):
    return ((x + m - 1) // m) * m


def _cdiv(a, b):
    return (a + b - 1) // b


def _sublane_mult(itemsize):
    return 8 if itemsize >= 4 else (16 if itemsize == 2 else 32)


@functools.lru_cache(maxsize=1)
def _vmem_capacity_bytes():
    """Generation-aware VMEM capacity (v5e/v6e: 128 MiB, v7x: 64 MiB)."""
    try:
        cap = int(pltpu.get_tpu_info().vmem_capacity_bytes)
        if cap > 0:
            return cap
    except Exception:
        pass
    return 64 * 1024 * 1024  # conservative default (v7x-sized)


def _vmem_working_set_bytes():
    # Target ~1/3 of physical VMEM for the pipelined working set.
    return _vmem_capacity_bytes() // 3


def _vmem_limit_bytes():
    return _vmem_capacity_bytes() // 2


def _small_problem_bytes():
    # Below this, XLA's fused stack+sum+activation beats pallas dispatch/prologue.
    return (4 if _vmem_capacity_bytes() >= 100 * 1024 * 1024 else 8) * 1024 * 1024


def _min_footprint_bytes(cols, n_messages, itemsize, input_buffers):
    """Padded VMEM footprint of the smallest legal tile (sublane_mult rows)."""
    sub = _sublane_mult(itemsize)
    padded_row = _round_up(cols, 128) * itemsize
    return padded_row * sub * (input_buffers * n_messages + 2)


def _make_kernel(n_messages: int, aggr_func: str, update_func, approx_sigmoid: bool):
    """Kernel body: unrolled sum over the M message refs + fused nonlinearity."""
    inv_n = 1.0 / float(n_messages)

    def kernel(*refs):
        in_refs = refs[:n_messages]
        o_ref = refs[n_messages]

        acc = in_refs[0][...].astype(jnp.float32)
        for r in in_refs[1:]:
            acc = acc + r[...].astype(jnp.float32)

        if aggr_func == "mean":
            acc = acc * inv_n  # constant reciprocal: avoids a VPU divide sequence

        if update_func == "sigmoid":
            if approx_sigmoid:
                # exp + approximate reciprocal both on the EUP slot: keeps the
                # VALU free so the activation overlaps the next block's DMA
                # (matters most on v7x where per-TC HBM BW is ~3.2 TB/s).
                e = jnp.exp(-acc)
                acc = pl.reciprocal(1.0 + e, approx=True)
            else:
                acc = jax.nn.sigmoid(acc)
        elif update_func == "relu":
            acc = jnp.maximum(acc, 0.0)
        elif update_func == "tanh":
            acc = jnp.tanh(acc)
        # update_func is None -> identity (matches `if update_func is not None`)

        o_ref[...] = acc.astype(o_ref.dtype)

    return kernel


def _choose_tile_rows(rows, cols, n_messages, itemsize, input_buffers):
    """Row-tile choice: ~8 grid steps, >=256 KiB blocks, padded-VMEM budgeted."""
    sub = _sublane_mult(itemsize)
    padded_row = _round_up(cols, 128) * itemsize            # real VMEM bytes / row
    per_row = padded_row * (input_buffers * n_messages + 2)  # in bufs + dbl-buf out

    max_rows = int(_vmem_working_set_bytes() // per_row)
    max_rows = max(sub, (max_rows // sub) * sub)

    # Aim for ~_TARGET_GRID_STEPS steps so the auto-pipeline can overlap the
    # per-block VPU/EUP work and the output writeback with the next input DMA.
    tile = _round_up(_cdiv(rows, _TARGET_GRID_STEPS), sub)
    # ...but keep each input block at least ~_MIN_BLOCK_BYTES.
    tile = max(tile, _round_up(_cdiv(_MIN_BLOCK_BYTES, padded_row), sub))
    # Hard VMEM cap.
    tile = min(tile, max_rows)
    # Never emit a grid of 1 when rows can be split: v7x has 2 TensorCores
    # sharing the grid via dimension_semantics=("parallel",).
    if rows > sub:
        tile = min(tile, _round_up(_cdiv(rows, 2), sub))
    tile = max(tile, sub)
    return rows if tile >= rows else tile


def _aggregation_pallas_2d(msgs, aggr_func, update_func, input_buffers, approx_sigmoid):
    rows, cols = msgs[0].shape
    m = len(msgs)
    itemsize = msgs[0].dtype.itemsize
    tile_r = _choose_tile_rows(rows, cols, m, itemsize, input_buffers)

    def index_map(i):
        return (i, 0)

    if input_buffers != 2:
        in_spec = pl.BlockSpec((tile_r, cols), index_map,
                               pipeline_mode=pl.Buffered(input_buffers))
    else:
        in_spec = pl.BlockSpec((tile_r, cols), index_map)
    out_spec = pl.BlockSpec((tile_r, cols), index_map)

    n_elem = rows * cols
    cost = pl.CostEstimate(
        flops=m * n_elem,
        transcendentals=(n_elem if update_func in ("sigmoid", "tanh") else 0),
        bytes_accessed=(m + 1) * n_elem * itemsize,
    )

    return pl.pallas_call(
        _make_kernel(m, aggr_func, update_func, approx_sigmoid),
        out_shape=jax.ShapeDtypeStruct((rows, cols), msgs[0].dtype),
        grid_spec=pltpu.PrefetchScalarGridSpec(
            num_scalar_prefetch=0,
            grid=(_cdiv(rows, tile_r),),
            in_specs=[in_spec] * m,
            out_specs=out_spec,
        ),
        compiler_params=pltpu.CompilerParams(
            dimension_semantics=("parallel",),
            vmem_limit_bytes=_vmem_limit_bytes(),
        ),
        cost_estimate=cost,
    )(*msgs)


@functools.partial(
    jax.jit,
    static_argnames=("aggr_func", "update_func", "input_buffers", "approx_sigmoid"),
)
def _aggregation_pallas_jit(*msgs, aggr_func, update_func, input_buffers, approx_sigmoid):
    return _aggregation_pallas_2d(msgs, aggr_func, update_func, input_buffers,
                                  approx_sigmoid)


def _aggregation_jnp(x_list, aggr_func, update_func):
    x = jnp.stack(x_list, axis=0)
    x = jnp.sum(x, axis=0) if aggr_func == "sum" else jnp.mean(x, axis=0)
    if update_func == "sigmoid":
        x = jax.nn.sigmoid(x)
    elif update_func == "relu":
        x = jax.nn.relu(x)
    elif update_func == "tanh":
        x = jnp.tanh(x)
    return x


def _best_row_pack(rows, cols):
    """Copy-free repack (rows, cols) -> (rows//k, k*cols) maximizing lane use."""
    best_k = 1
    best_util = cols / float(_round_up(cols, 128))
    for k in range(2, rows + 1):
        if rows % k:
            continue
        width = k * cols
        if width > _MAX_REPACK_WIDTH or rows // k < 16:
            break  # keep per-row bytes modest and enough rows to split the grid
        util = width / float(_round_up(width, 128))
        if util > best_util + 1e-12:
            best_k, best_util = k, util
    return best_k


class Aggregation:
    """JAX/Pallas equivalent of the PyTorch Aggregation module.

    Note: the PyTorch default `update_func='simoid'` is a typo that makes
    `update()` return None; we use the intended 'sigmoid' default here.
    `approx_sigmoid=True` enables the EUP approximate-reciprocal sigmoid
    (~1e-4 abs error; helpful on v7x); exact by default.
    """

    def __init__(self, aggr_func: str = "sum", update_func: str = "sigmoid",
                 approx_sigmoid: bool = False):
        assert aggr_func in ("sum", "mean")
        assert update_func in ("sigmoid", "relu", "tanh", None)
        self.aggr_func = aggr_func
        self.update_func = update_func
        self.approx_sigmoid = bool(approx_sigmoid)

    def _dispatch(self, msgs):
        global _TRIPLE_BUFFER_OK
        _, cols = msgs[0].shape
        m = len(msgs)
        itemsize = msgs[0].dtype.itemsize

        bufs = 2
        if (_TRIPLE_BUFFER_OK
                and _vmem_capacity_bytes() >= 100 * 1024 * 1024
                and _min_footprint_bytes(cols, m, itemsize, 3)
                <= _vmem_working_set_bytes()):
            bufs = 3  # v5e/v6e (128 MiB VMEM): 3-deep input pipelining is free

        try:
            return _aggregation_pallas_jit(
                *msgs, aggr_func=self.aggr_func, update_func=self.update_func,
                input_buffers=bufs, approx_sigmoid=self.approx_sigmoid)
        except Exception:
            if bufs == 2:
                raise
            _TRIPLE_BUFFER_OK = False  # pl.Buffered(3) unsupported -> default pipeline
            return _aggregation_pallas_jit(
                *msgs, aggr_func=self.aggr_func, update_func=self.update_func,
                input_buffers=2, approx_sigmoid=self.approx_sigmoid)

    def __call__(self, x_list, *, force_pallas: bool = False):
        assert len(x_list) >= 1
        x_list = [jnp.asarray(x) for x in x_list]
        n, c = x_list[0].shape
        m = len(x_list)
        itemsize = x_list[0].dtype.itemsize
        total_bytes = (m + 1) * n * c * itemsize

        # Tiny problems: pallas dispatch / pipeline prologue would dominate.
        if not force_pallas and total_bytes < _small_problem_bytes():
            return _aggregation_jnp(x_list, self.aggr_func, self.update_func)

        total = n * c
        if total % 128 == 0:
            # Lane-dense view: (N, C) -> (N*C//128, 128); free, contiguous.
            msgs = [x.reshape(total // 128, 128) for x in x_list]
        else:
            # Copy-free row repack for C not lane-aligned (e.g. (100,24)->(20,120)).
            k = _best_row_pack(n, c)
            msgs = [x.reshape(n // k, k * c) for x in x_list] if k > 1 else x_list

        _, cols = msgs[0].shape
        # Pathological guard: if even a minimal tile cannot fit the VMEM working
        # set (extremely wide rows), let XLA handle it instead of failing.
        if _min_footprint_bytes(cols, m, itemsize, 2) > _vmem_working_set_bytes():
            return _aggregation_jnp(x_list, self.aggr_func, self.update_func)

        out = self._dispatch(msgs)
        return out.reshape(n, c)


if __name__ == "__main__":
    key = jax.random.PRNGKey(0)

    def ref(x_list, aggr, upd):
        x = jnp.stack(x_list, axis=0)
        x = jnp.sum(x, axis=0) if aggr == "sum" else jnp.mean(x, axis=0)
        if upd == "sigmoid":
            x = jax.nn.sigmoid(x)
        elif upd == "relu":
            x = jax.nn.relu(x)
        elif upd == "tanh":
            x = jnp.tanh(x)
        return x

    # Case 1: docstring-scale shapes (n_skel=16, channels=32, 3 messages)
    # -> small-problem jnp fast path.
    keys = jax.random.split(key, 3)
    x_small = [jax.random.normal(k, (16, 32), dtype=jnp.float32) for k in keys]
    agg = Aggregation("sum", "sigmoid")
    out = jax.block_until_ready(agg(x_small))
    assert out.shape == (16, 32)
    assert jnp.allclose(out, ref(x_small, "sum", "sigmoid"), atol=1e-6, rtol=1e-6)

    # Case 2: Pallas lane-dense path (N*C % 128 == 0): (512, 32), 3 messages,
    # >= 2 grid steps, sum + sigmoid.
    keys2 = jax.random.split(jax.random.PRNGKey(1), 3)
    x2 = [jax.random.normal(k, (512, 32), dtype=jnp.float32) for k in keys2]
    out2 = jax.block_until_ready(agg(x2, force_pallas=True))
    assert out2.shape == (512, 32)
    assert jnp.allclose(out2, ref(x2, "sum", "sigmoid"), atol=1e-5, rtol=1e-5)

    # Case 3: mean/tanh with N*C % 128 != 0 -> copy-free repack (100,24)->(20,120).
    agg3 = Aggregation("mean", "tanh")
    keys3 = jax.random.split(jax.random.PRNGKey(2), 4)
    x3 = [jax.random.normal(k, (100, 24), dtype=jnp.float32) for k in keys3]
    out3 = jax.block_until_ready(agg3(x3, force_pallas=True))
    assert out3.shape == (100, 24)
    assert jnp.allclose(out3, ref(x3, "mean", "tanh"), atol=1e-5, rtol=1e-5)

    # Case 4: relu and identity updates on the Pallas path.
    agg4 = Aggregation("sum", "relu")
    out4 = jax.block_until_ready(agg4(x2, force_pallas=True))
    assert jnp.allclose(out4, ref(x2, "sum", "relu"), atol=1e-5, rtol=1e-5)
    agg5 = Aggregation("sum", None)
    out5 = jax.block_until_ready(agg5(x2, force_pallas=True))
    assert jnp.allclose(out5, ref(x2, "sum", None), atol=1e-5, rtol=1e-5)

    # Case 5: optional approximate-sigmoid micro-opt (EUP reciprocal, ~1e-4 abs).
    agg6 = Aggregation("sum", "sigmoid", approx_sigmoid=True)
    out6 = jax.block_until_ready(agg6(x2, force_pallas=True))
    assert jnp.allclose(out6, ref(x2, "sum", "sigmoid"), atol=2e-3, rtol=2e-3)

    print("KERNEL_OK")
</pallas_src>

<mosaic_0001>
module attributes {stable_mosaic.version = 11 : i64} {
  func.func @kernel(%arg0: i32, %arg1: memref<64x128xf32, #tpu.memory_space<vmem>>, %arg2: memref<64x128xf32, #tpu.memory_space<vmem>>, %arg3: memref<64x128xf32, #tpu.memory_space<vmem>>, %arg4: memref<64x128xf32, #tpu.memory_space<vmem>>) attributes {dimension_semantics = [#tpu.dimension_semantics<parallel>], iteration_bounds = array<i64: 2>, scalar_prefetch = 0 : i64, scratch_operands = 0 : i64, tpu.core_type = #tpu.core_type<tc>, window_params = [{transform_indices = @transform_0, window_bounds = array<i64: 64, 128>}, {transform_indices = @transform_1, window_bounds = array<i64: 64, 128>}, {transform_indices = @transform_2, window_bounds = array<i64: 64, 128>}, {transform_indices = @transform_3, window_bounds = array<i64: 64, 128>}]} {
    %c0 = arith.constant 0 : index
    %c0_0 = arith.constant 0 : index
    %0 = vector.load %arg1[%c0, %c0_0] : memref<64x128xf32, #tpu.memory_space<vmem>>, vector<64x128xf32>
    %c0_1 = arith.constant 0 : index
    %c0_2 = arith.constant 0 : index
    %1 = vector.load %arg2[%c0_1, %c0_2] : memref<64x128xf32, #tpu.memory_space<vmem>>, vector<64x128xf32>
    %2 = arith.addf %0, %1 : vector<64x128xf32>
    %c0_3 = arith.constant 0 : index
    %c0_4 = arith.constant 0 : index
    %3 = vector.load %arg3[%c0_3, %c0_4] : memref<64x128xf32, #tpu.memory_space<vmem>>, vector<64x128xf32>
    %4 = arith.addf %2, %3 : vector<64x128xf32>
    %5 = arith.negf %4 : vector<64x128xf32>
    %6 = math.exp %5 : vector<64x128xf32>
    %cst = arith.constant 1.000000e+00 : f32
    %7 = vector.broadcast %cst : f32 to vector<64x128xf32>
    %8 = arith.addf %7, %6 : vector<64x128xf32>
    %9 = arith.divf %7, %8 : vector<64x128xf32>
    %c0_5 = arith.constant 0 : index
    %c0_6 = arith.constant 0 : index
    %10 = vector.load %arg4[%c0_5, %c0_6] : memref<64x128xf32, #tpu.memory_space<vmem>>, vector<64x128xf32>
    tpu.vector_store %arg4[%c0_5, %c0_6], %9 {strides = array<i32>} : memref<64x128xf32, #tpu.memory_space<vmem>>, vector<64x128xf32>,
    return
  }
  func.func @transform_0(%arg0: i32) -> (i32, i32) {
    %c0_i32 = arith.constant 0 : i32
    %c0_i32_0 = arith.constant 0 : i32
    return %arg0, %c0_i32 : i32, i32
  }
  func.func @transform_1(%arg0: i32) -> (i32, i32) {
    %c0_i32 = arith.constant 0 : i32
    %c0_i32_0 = arith.constant 0 : i32
    return %arg0, %c0_i32 : i32, i32
  }
  func.func @transform_2(%arg0: i32) -> (i32, i32) {
    %c0_i32 = arith.constant 0 : i32
    %c0_i32_0 = arith.constant 0 : i32
    return %arg0, %c0_i32 : i32, i32
  }
  func.func @transform_3(%arg0: i32) -> (i32, i32) {
    %c0_i32 = arith.constant 0 : i32
    %c0_i32_0 = arith.constant 0 : i32
    return %arg0, %c0_i32 : i32, i32
  }
}

</mosaic_0001>

<llo_original>
// kernel: _aggregation_pallas_jit.1
$region0: #{_aggregation_pallas_jit.1}
  #allocation0 [shape = 'u32[]', space=smem, size = 0x4, offset = 0x4, fixed_abs, tag = 'smem constant byte address 0x4 - core index']
  #allocation1 [shape = 'u32[72,128]{1,0:T(1,128)}', space=vmem, size = 0x9000, scoped, tag = 'internal scratch']
  %s0 = inlined_call_operand.hbm [shape: f32[128,128], index: 0, kind: input, shape index: {}]
  %s1 = inlined_call_operand.hbm [shape: f32[128,128], index: 1, kind: input, shape index: {}]
  %s2 = inlined_call_operand.hbm [shape: f32[128,128], index: 2, kind: input, shape index: {}]
  %s3 = inlined_call_operand.hbm [shape: f32[128,128], index: 3, kind: output, shape index: {}]
  %s4 = sld [smem:[#allocation0]]
  $region57: #{_aggregation_pallas_jit.1} parent=0
    _
  %s6 = ssub.s32 1, %s4
  %s7 = scalar_select 0, %s6, %s4
  $region1: #{_aggregation_pallas_jit.1} parent=0
    #allocation2 [shape = 'u8[65536]{0}', space=vmem, size = 0x10000, scoped, tag = 'input window, operand 0']
    #allocation3 [shape = 's32[2]{0}', space=sflag, size = 0x8, scoped, tag = 'scoped memory for _aggregation_pallas_jit.1']
    #allocation4 [shape = 's32[2]{0}', space=sflag, size = 0x8, scoped, tag = 'scoped memory for _aggregation_pallas_jit.1']
    #allocation5 [shape = 'u8[65536]{0}', space=vmem, size = 0x10000, scoped, tag = 'input window, operand 1']
    #allocation6 [shape = 's32[2]{0}', space=sflag, size = 0x8, scoped, tag = 'scoped memory for _aggregation_pallas_jit.1']
    #allocation7 [shape = 'u8[65536]{0}', space=vmem, size = 0x10000, scoped, tag = 'input window, operand 2']
    #allocation8 [shape = 'u8[65536]{0}', space=vmem, size = 0x10000, scoped, tag = 'output window, operand 0']
    %8 = vsyncpa [#allocation3], 0
    %s9 = scalar_lea.sflag [#allocation3], 1
    %10 = vsyncpa %s9, 0
    %11 = vsyncpa [#allocation6], 0
    %s12 = scalar_lea.sflag [#allocation6], 1
    %13 = vsyncpa %s12, 0
    %14 = vsyncpa [#allocation4], 0
    %s15 = scalar_lea.sflag [#allocation4], 1
    %16 = vsyncpa %s15, 0
    loop: start=0, step=1, limit=4
    $region2: #{_aggregation_pallas_jit.1} parent=1 // loop_pre_header
      _
    $region3: #{_aggregation_pallas_jit.1} parent=1 // loop_header
      %s18 = sphi 0, %s22
      %p19 = scmp.ge.s32.totalorder %s18, 4
      %s28 = sphi 0, %s30
      %s31 = sphi 0, %s28
      %s32 = sphi 0, %s31
      %s48 = sphi 0, %s32
      %s54 = sphi 0, %s56
      %s57 = sphi 0, %s54
      %s58 = sphi 0, %s57
      %s74 = sphi 0, %s58
      %s80 = sphi 0, %s82
      %s83 = sphi 0, %s80
      %s84 = sphi 0, %s83
      %s100 = sphi 0, %s84
      %s106 = sphi 0, %s108
      %s109 = sphi 0, %s106
      %s110 = sphi 0, %s109
      %s126 = sphi 0, %s110
    $region4: #{_aggregation_pallas_jit.1} parent=1 // loop_header_branch
      %21 = sbr.rel (%p19) target = $region8
    $region5: #{_aggregation_pallas_jit.1} parent=1 // loop_body
      %s23 = ssub.s32 %s18, 1
      %s24 = ssub.s32 %s18, 2
      %s25 = sadd.s32 %s18, 1
      %s26 = ssub.s32 %s18, %s25
      %p27 = scmp.eq.s32.totalorder %s26, 0
      %s29 = sadd.s32 %s28, 1
      %s30 = scalar_select %p27, %s28, %s29
      %p33 = pneg %p27
      %p34 = scmp.eq.s32.totalorder %s18, 1
      %p35 = por %p33, %p34
      %p36 = scmp.ne.s32.totalorder %s28, %s31
      %p37 = scmp.eq.s32.totalorder %s18, 0
      %p38 = por %p36, %p37
      %p39 = scmp.ne.s32.totalorder %s28, %s31
      %p40 = scmp.eq.s32.totalorder %s23, 1
      %p41 = por %p39, %p40
      %p42 = scmp.ne.s32.totalorder %s31, %s32
      %p43 = scmp.eq.s32.totalorder %s23, 0
      %p44 = por %p42, %p43
      %p45 = scmp.ne.s32.totalorder %s31, %s32
      %p46 = scmp.eq.s32.totalorder %s24, 1
      %p47 = por %p45, %p46
      %p49 = scmp.ne.s32.totalorder %s32, %s48
      %p50 = scmp.eq.s32.totalorder %s24, 0
      %p51 = por %p49, %p50
      %s52 = ssub.s32 %s18, %s25
      %p53 = scmp.eq.s32.totalorder %s52, 0
      %s55 = sadd.s32 %s54, 1
      %s56 = scalar_select %p53, %s54, %s55
      %p59 = pneg %p53
      %p60 = scmp.eq.s32.totalorder %s18, 1
      %p61 = por %p59, %p60
      %p62 = scmp.ne.s32.totalorder %s54, %s57
      %p63 = scmp.eq.s32.totalorder %s18, 0
      %p64 = por %p62, %p63
      %p65 = scmp.ne.s32.totalorder %s54, %s57
      %p66 = scmp.eq.s32.totalorder %s23, 1
      %p67 = por %p65, %p66
      %p68 = scmp.ne.s32.totalorder %s57, %s58
      %p69 = scmp.eq.s32.totalorder %s23, 0
      %p70 = por %p68, %p69
      %p71 = scmp.ne.s32.totalorder %s57, %s58
      %p72 = scmp.eq.s32.totalorder %s24, 1
      %p73 = por %p71, %p72
      %p75 = scmp.ne.s32.totalorder %s58, %s74
      %p76 = scmp.eq.s32.totalorder %s24, 0
      %p77 = por %p75, %p76
      %s78 = ssub.s32 %s18, %s25
      %p79 = scmp.eq.s32.totalorder %s78, 0
      %s81 = sadd.s32 %s80, 1
      %s82 = scalar_select %p79, %s80, %s81
      %p85 = pneg %p79
      %p86 = scmp.eq.s32.totalorder %s18, 1
      %p87 = por %p85, %p86
      %p88 = scmp.ne.s32.totalorder %s80, %s83
      %p89 = scmp.eq.s32.totalorder %s18, 0
      %p90 = por %p88, %p89
      %p91 = scmp.ne.s32.totalorder %s80, %s83
      %p92 = scmp.eq.s32.totalorder %s23, 1
      %p93 = por %p91, %p92
      %p94 = scmp.ne.s32.totalorder %s83, %s84
      %p95 = scmp.eq.s32.totalorder %s23, 0
      %p96 = por %p94, %p95
      %p97 = scmp.ne.s32.totalorder %s83, %s84
      %p98 = scmp.eq.s32.totalorder %s24, 1
      %p99 = por %p97, %p98
      %p101 = scmp.ne.s32.totalorder %s84, %s100
      %p102 = scmp.eq.s32.totalorder %s24, 0
      %p103 = por %p101, %p102
      %s104 = ssub.s32 %s18, %s25
      %p105 = scmp.eq.s32.totalorder %s104, 0
      %s107 = sadd.s32 %s106, 1
      %s108 = scalar_select %p105, %s106, %s107
      %p111 = pneg %p105
      %p112 = scmp.eq.s32.totalorder %s18, 1
      %p113 = por %p111, %p112
      %p114 = scmp.ne.s32.totalorder %s106, %s109
      %p115 = scmp.eq.s32.totalorder %s18, 0
      %p116 = por %p114, %p115
      %p117 = scmp.ne.s32.totalorder %s106, %s109
      %p118 = scmp.eq.s32.totalorder %s23, 1
      %p119 = por %p117, %p118
      %p120 = scmp.ne.s32.totalorder %s109, %s110
      %p121 = scmp.eq.s32.totalorder %s23, 0
      %p122 = por %p120, %p121
      %p123 = scmp.ne.s32.totalorder %s109, %s110
      %p124 = scmp.eq.s32.totalorder %s24, 1
      %p125 = por %p123, %p124
      %p127 = scmp.ne.s32.totalorder %s110, %s126
      %p128 = scmp.eq.s32.totalorder %s24, 0
      %p129 = por %p127, %p128
      %p130 = scmp.le.s32.totalorder 1, %s18
      %p131 = scmp.lt.s32.totalorder %s18, 3
      %p132 = pnand %p130, %p131
      %p133 = pneg %p132
      // Predicated region
      $region9: #{_aggregation_pallas_jit.1} parent=5 // pred_check
        _
      $region10: #{_aggregation_pallas_jit.1} parent=5 // pred_check_branch
        %135 = sbr.rel (%p132) target = $region12
      $region11: #{_aggregation_pallas_jit.1} parent=5 // pred_region
        %s136 = ssub.s32 %s18, 1
      $region12: #{_aggregation_pallas_jit.1} parent=5 // pred_fallthru
        _
      %p137 = scmp.lt.s32.totalorder %s18, 2
      // Predicated region
      $region13: #{_aggregation_pallas_jit.1} parent=5 // pred_check
        %p138 = pneg %p137
      $region14: #{_aggregation_pallas_jit.1} parent=5 // pred_check_branch
        %140 = sbr.rel (%p138) target = $region16
      $region15: #{_aggregation_pallas_jit.1} parent=5 // pred_region
        // Predicated region
        $region17: #{_aggregation_pallas_jit.1} parent=15 // pred_check
          %p141 = pneg %p38
        $region18: #{_aggregation_pallas_jit.1} parent=15 // pred_check_branch
          %143 = sbr.rel (%p141) target = $region20
        $region19: #{_aggregation_pallas_jit.1} parent=15 // pred_region
          %s144 = sand.u32 %s28, 1
          %s145 = scalar_lea.sflag [#allocation3], %s144
          %s146 = sand.u32 %s28, 1
          %s147 = smul.addr %s146, 64
          %s148 = scalar_lea.vmem [#allocation2], %s147
          %s149 = smul.u32 8, %s18
          %151 = vsyncadd %s145, 0
          %s152 = smul.addr %s149, 8
          %s153 = scalar_lea.hbm %s0, %s152
          %s154 = sshll.u32 %s153, 4
          %s155 = int_to_ptr.hbm [resolvable:$true] %s154
          %s156 = sshll.u32 %s148, 4
          %s157 = int_to_ptr.vmem [resolvable:$true] %s156
          %162 = dma.hbm_to_vmem [thread:$0]  %s155, 1024, %s157, %s145, 128, 128, 8
        $region20: #{_aggregation_pallas_jit.1} parent=15 // pred_fallthru
          _
        // Predicated region
        $region21: #{_aggregation_pallas_jit.1} parent=15 // pred_check
          %p163 = pneg %p64
        $region22: #{_aggregation_pallas_jit.1} parent=15 // pred_check_branch
          %165 = sbr.rel (%p163) target = $region24
        $region23: #{_aggregation_pallas_jit.1} parent=15 // pred_region
          %s166 = sand.u32 %s18, 1
          %s167 = scalar_lea.sflag [#allocation6], %s166
          %s168 = sand.u32 %s54, 1
          %s169 = smul.addr %s168, 64
          %s170 = scalar_lea.vmem [#allocation5], %s169
          %s171 = smul.u32 8, %s18
          %173 = vsyncadd %s167, 0
          %s174 = smul.addr %s171, 8
          %s175 = scalar_lea.hbm %s1, %s174
          %s176 = sshll.u32 %s175, 4
          %s177 = int_to_ptr.hbm [resolvable:$true] %s176
          %s178 = sshll.u32 %s170, 4
          %s179 = int_to_ptr.vmem [resolvable:$true] %s178
          %184 = dma.hbm_to_vmem [thread:$0]  %s177, 1024, %s179, %s167, 128, 128, 8
        $region24: #{_aggregation_pallas_jit.1} parent=15 // pred_fallthru
          _
        // Predicated region
        $region25: #{_aggregation_pallas_jit.1} parent=15 // pred_check
          %p185 = pneg %p90
        $region26: #{_aggregation_pallas_jit.1} parent=15 // pred_check_branch
          %187 = sbr.rel (%p185) target = $region28
        $region27: #{_aggregation_pallas_jit.1} parent=15 // pred_region
          %s188 = sand.u32 %s18, 1
          %s189 = scalar_lea.sflag [#allocation6], %s188
          %s190 = sand.u32 %s80, 1
          %s191 = smul.addr %s190, 64
          %s192 = scalar_lea.vmem [#allocation7], %s191
          %s193 = smul.u32 8, %s18
          %195 = vsyncadd %s189, 0
          %s196 = smul.addr %s193, 8
          %s197 = scalar_lea.hbm %s2, %s196
          %s198 = sshll.u32 %s197, 4
          %s199 = int_to_ptr.hbm [resolvable:$true] %s198
          %s200 = sshll.u32 %s192, 4
          %s201 = int_to_ptr.vmem [resolvable:$true] %s200
          %206 = dma.hbm_to_vmem [thread:$0]  %s199, 1024, %s201, %s189, 128, 128, 8
        $region28: #{_aggregation_pallas_jit.1} parent=15 // pred_fallthru
          _
      $region16: #{_aggregation_pallas_jit.1} parent=5 // pred_fallthru
        _
      %p207 = scmp.le.s32.totalorder 1, %s18
      %p208 = scmp.lt.s32.totalorder %s18, 3
      %p209 = pnand %p207, %p208
      %p210 = pneg %p209
      // Predicated region
      $region29: #{_aggregation_pallas_jit.1} parent=5 // pred_check
        _
      $region30: #{_aggregation_pallas_jit.1} parent=5 // pred_check_branch
        %212 = sbr.rel (%p209) target = $region32
      $region31: #{_aggregation_pallas_jit.1} parent=5 // pred_region
        %s213 = ssub.s32 %s18, 1
        %s214 = sand.u32 %s31, 1
        %s215 = scalar_lea.sflag [#allocation3], %s214
        %s216 = sand.u32 %s31, 1
        %s217 = smul.addr %s216, 64
        %s218 = scalar_lea.vmem [#allocation2], %s217
        // Predicated region
        $region33: #{_aggregation_pallas_jit.1} parent=31 // pred_check
          %p219 = pneg %p44
        $region34: #{_aggregation_pallas_jit.1} parent=31 // pred_check_branch
          %221 = sbr.rel (%p219) target = $region36
        $region35: #{_aggregation_pallas_jit.1} parent=31 // pred_region
          %223 = dma.done %s215, 1024
        $region36: #{_aggregation_pallas_jit.1} parent=31 // pred_fallthru
          _
        %s224 = sand.u32 %s23, 1
        %s225 = scalar_lea.sflag [#allocation6], %s224
        %s226 = sand.u32 %s57, 1
        %s227 = smul.addr %s226, 64
        %s228 = scalar_lea.vmem [#allocation5], %s227
        // Predicated region
        $region37: #{_aggregation_pallas_jit.1} parent=31 // pred_check
          %p229 = pneg %p70
        $region38: #{_aggregation_pallas_jit.1} parent=31 // pred_check_branch
          %231 = sbr.rel (%p229) target = $region40
        $region39: #{_aggregation_pallas_jit.1} parent=31 // pred_region
          %233 = dma.done %s225, 1024
        $region40: #{_aggregation_pallas_jit.1} parent=31 // pred_fallthru
          _
        %s234 = sand.u32 %s23, 1
        %s235 = scalar_lea.sflag [#allocation6], %s234
        %s236 = sand.u32 %s83, 1
        %s237 = smul.addr %s236, 64
        %s238 = scalar_lea.vmem [#allocation7], %s237
        // Predicated region
        $region41: #{_aggregation_pallas_jit.1} parent=31 // pred_check
          %p239 = pneg %p96
        $region42: #{_aggregation_pallas_jit.1} parent=31 // pred_check_branch
          %241 = sbr.rel (%p239) target = $region44
        $region43: #{_aggregation_pallas_jit.1} parent=31 // pred_region
          %243 = dma.done %s235, 1024
        $region44: #{_aggregation_pallas_jit.1} parent=31 // pred_fallthru
          _
        %s244 = sand.u32 %s31, 1
        %s245 = scalar_lea.sflag [#allocation3], %s244
        %s246 = sand.u32 %s31, 1
        %s247 = smul.addr %s246, 64
        %s248 = scalar_lea.vmem [#allocation2], %s247
        %p249 = pneg %p44
        %p250 = pneg %p41
        %s251 = sand.u32 %s23, 1
        %s252 = scalar_lea.sflag [#allocation6], %s251
        %s253 = sand.u32 %s57, 1
        %s254 = smul.addr %s253, 64
        %s255 = scalar_lea.vmem [#allocation5], %s254
        %p256 = pneg %p70
        %p257 = pneg %p67
        %s258 = sand.u32 %s23, 1
        %s259 = scalar_lea.sflag [#allocation6], %s258
        %s260 = sand.u32 %s83, 1
        %s261 = smul.addr %s260, 64
        %s262 = scalar_lea.vmem [#allocation7], %s261
        %p263 = pneg %p96
        %p264 = pneg %p93
        %p265 = pneg %p122
        %p266 = pneg %p119
        %s267 = sand.u32 %s109, 1
        %s268 = scalar_lea.sflag [#allocation4], %s267
        %s269 = sand.u32 %s109, 1
        %s270 = smul.addr %s269, 64
        %s271 = scalar_lea.vmem [#allocation8], %s270
        %s272 = smul.u32 8, %s23
        %s273 = smul.u32 8, %s23
        %s274 = smul.u32 8, %s23
        %s275 = smul.u32 8, %s23
        %v276 = vld [vmem:[%s218] sm:$0xff]
        %v277 = vld [vmem:[%s218 + $0x8] sm:$0xff]
        %v278 = vld [vmem:[%s218 + $0x10] sm:$0xff]
        %v279 = vld [vmem:[%s218 + $0x18] sm:$0xff]
        %v280 = vld [vmem:[%s218 + $0x20] sm:$0xff]
        %v281 = vld [vmem:[%s218 + $0x28] sm:$0xff]
        %v282 = vld [vmem:[%s218 + $0x30] sm:$0xff]
        %v283 = vld [vmem:[%s218 + $0x38] sm:$0xff]
        %v284 = vld [vmem:[%s228] sm:$0xff]
        %v285 = vld [vmem:[%s228 + $0x8] sm:$0xff]
        %v286 = vld [vmem:[%s228 + $0x10] sm:$0xff]
        %v287 = vld [vmem:[%s228 + $0x18] sm:$0xff]
        %v288 = vld [vmem:[%s228 + $0x20] sm:$0xff]
        %v289 = vld [vmem:[%s228 + $0x28] sm:$0xff]
        %v290 = vld [vmem:[%s228 + $0x30] sm:$0xff]
        %v291 = vld [vmem:[%s228 + $0x38] sm:$0xff]
        %v292 = vadd.f32 %v276, %v284
        %v293 = vadd.f32 %v277, %v285
        %v294 = vadd.f32 %v278, %v286
        %v295 = vadd.f32 %v279, %v287
        %v296 = vadd.f32 %v280, %v288
        %v297 = vadd.f32 %v281, %v289
        %v298 = vadd.f32 %v282, %v290
        %v299 = vadd.f32 %v283, %v291
        %v300 = vld [vmem:[%s238] sm:$0xff]
        %v301 = vld [vmem:[%s238 + $0x8] sm:$0xff]
        %v302 = vld [vmem:[%s238 + $0x10] sm:$0xff]
        %v303 = vld [vmem:[%s238 + $0x18] sm:$0xff]
        %v304 = vld [vmem:[%s238 + $0x20] sm:$0xff]
        %v305 = vld [vmem:[%s238 + $0x28] sm:$0xff]
        %v306 = vld [vmem:[%s238 + $0x30] sm:$0xff]
        %v307 = vld [vmem:[%s238 + $0x38] sm:$0xff]
        %v308 = vadd.f32 %v292, %v300
        %v309 = vadd.f32 %v293, %v301
        %v310 = vadd.f32 %v294, %v302
        %v311 = vadd.f32 %v295, %v303
        %v312 = vadd.f32 %v296, %v304
        %v313 = vadd.f32 %v297, %v305
        %v314 = vadd.f32 %v298, %v306
        %v315 = vadd.f32 %v299, %v307
        %v316 = vxor.u32 %v308, 2147483648
        %v317 = vxor.u32 %v309, 2147483648
        %v318 = vxor.u32 %v310, 2147483648
        %v319 = vxor.u32 %v311, 2147483648
        %v320 = vxor.u32 %v312, 2147483648
        %v321 = vxor.u32 %v313, 2147483648
        %v322 = vxor.u32 %v314, 2147483648
        %v323 = vxor.u32 %v315, 2147483648
        %v324 = vmul.f32 %v316, 1.442695
        %v325 = vpow.pop %v324
        %v326 = vmul.f32 %v317, 1.442695
        %v327 = vpow.pop %v326
        %v328 = vmul.f32 %v318, 1.442695
        %v329 = vpow.pop %v328
        %v330 = vmul.f32 %v319, 1.442695
        %v331 = vpow.pop %v330
        %v332 = vmul.f32 %v320, 1.442695
        %v333 = vpow.pop %v332
        %v334 = vmul.f32 %v321, 1.442695
        %v335 = vpow.pop %v334
        %v336 = vmul.f32 %v322, 1.442695
        %v337 = vpow.pop %v336
        %v338 = vmul.f32 %v323, 1.442695
        %v339 = vpow.pop %v338
        %v340 = vadd.f32 %v325, 1.0
        %v341 = vadd.f32 %v327, 1.0
        %v342 = vadd.f32 %v329, 1.0
        %v343 = vadd.f32 %v331, 1.0
        %v344 = vadd.f32 %v333, 1.0
        %v345 = vadd.f32 %v335, 1.0
        %v346 = vadd.f32 %v337, 1.0
        %v347 = vadd.f32 %v339, 1.0
        %v348 = vrcp.pop %v340
        %v349 = vmul.f32 %v340, %v348
        %v350 = vsub.f32 1.0, %v349
        %v351 = vmul.f32 %v348, %v350
        %v352 = vadd.f32 %v348, %v351
        %vm353 = vweird.f32 %v340
        %vm354 = vweird.f32 %v348
        %vm355 = vmor %vm353, %vm354
        %v356 = vsel %vm355, %v348, %v352
        %v357 = vand.u32 2147483647, %v340
        %vm358 = vcmp.eq.f32.partialorder %v357, 8.507059e+37
        %v359 = vand.u32 %v340, 2147483648
        %v360 = vor.u32 1.1754944e-38, %v359
        %v361 = vsel %vm358, %v360, %v356
        %v362 = vmul.f32 1.0, %v361
        %v363 = vrcp.pop %v341
        %v364 = vmul.f32 %v341, %v363
        %v365 = vsub.f32 1.0, %v364
        %v366 = vmul.f32 %v363, %v365
        %v367 = vadd.f32 %v363, %v366
        %vm368 = vweird.f32 %v341
        %vm369 = vweird.f32 %v363
        %vm370 = vmor %vm368, %vm369
        %v371 = vsel %vm370, %v363, %v367
        %v372 = vand.u32 2147483647, %v341
        %vm373 = vcmp.eq.f32.partialorder %v372, 8.507059e+37
        %v374 = vand.u32 %v341, 2147483648
        %v375 = vor.u32 1.1754944e-38, %v374
        %v376 = vsel %vm373, %v375, %v371
        %v377 = vmul.f32 1.0, %v376
        %v378 = vrcp.pop %v342
        %v379 = vmul.f32 %v342, %v378
        %v380 = vsub.f32 1.0, %v379
        %v381 = vmul.f32 %v378, %v380
        %v382 = vadd.f32 %v378, %v381
        %vm383 = vweird.f32 %v342
        %vm384 = vweird.f32 %v378
        %vm385 = vmor %vm383, %vm384
        %v386 = vsel %vm385, %v378, %v382
        %v387 = vand.u32 2147483647, %v342
        %vm388 = vcmp.eq.f32.partialorder %v387, 8.507059e+37
        %v389 = vand.u32 %v342, 2147483648
        %v390 = vor.u32 1.1754944e-38, %v389
        %v391 = vsel %vm388, %v390, %v386
        %v392 = vmul.f32 1.0, %v391
        %v393 = vrcp.pop %v343
        %v394 = vmul.f32 %v343, %v393
        %v395 = vsub.f32 1.0, %v394
        %v396 = vmul.f32 %v393, %v395
        %v397 = vadd.f32 %v393, %v396
        %vm398 = vweird.f32 %v343
        %vm399 = vweird.f32 %v393
        %vm400 = vmor %vm398, %vm399
        %v401 = vsel %vm400, %v393, %v397
        %v402 = vand.u32 2147483647, %v343
        %vm403 = vcmp.eq.f32.partialorder %v402, 8.507059e+37
        %v404 = vand.u32 %v343, 2147483648
        %v405 = vor.u32 1.1754944e-38, %v404
        %v406 = vsel %vm403, %v405, %v401
        %v407 = vmul.f32 1.0, %v406
        %v408 = vrcp.pop %v344
        %v409 = vmul.f32 %v344, %v408
        %v410 = vsub.f32 1.0, %v409
        %v411 = vmul.f32 %v408, %v410
        %v412 = vadd.f32 %v408, %v411
        %vm413 = vweird.f32 %v344
        %vm414 = vweird.f32 %v408
        %vm415 = vmor %vm413, %vm414
        %v416 = vsel %vm415, %v408, %v412
        %v417 = vand.u32 2147483647, %v344
        %vm418 = vcmp.eq.f32.partialorder %v417, 8.507059e+37
        %v419 = vand.u32 %v344, 2147483648
        %v420 = vor.u32 1.1754944e-38, %v419
        %v421 = vsel %vm418, %v420, %v416
        %v422 = vmul.f32 1.0, %v421
        %v423 = vrcp.pop %v345
        %v424 = vmul.f32 %v345, %v423
        %v425 = vsub.f32 1.0, %v424
        %v426 = vmul.f32 %v423, %v425
        %v427 = vadd.f32 %v423, %v426
        %vm428 = vweird.f32 %v345
        %vm429 = vweird.f32 %v423
        %vm430 = vmor %vm428, %vm429
        %v431 = vsel %vm430, %v423, %v427
        %v432 = vand.u32 2147483647, %v345
        %vm433 = vcmp.eq.f32.partialorder %v432, 8.507059e+37
        %v434 = vand.u32 %v345, 2147483648
        %v435 = vor.u32 1.1754944e-38, %v434
        %v436 = vsel %vm433, %v435, %v431
        %v437 = vmul.f32 1.0, %v436
        %v438 = vrcp.pop %v346
        %v439 = vmul.f32 %v346, %v438
        %v440 = vsub.f32 1.0, %v439
        %v441 = vmul.f32 %v438, %v440
        %v442 = vadd.f32 %v438, %v441
        %vm443 = vweird.f32 %v346
        %vm444 = vweird.f32 %v438
        %vm445 = vmor %vm443, %vm444
        %v446 = vsel %vm445, %v438, %v442
        %v447 = vand.u32 2147483647, %v346
        %vm448 = vcmp.eq.f32.partialorder %v447, 8.507059e+37
        %v449 = vand.u32 %v346, 2147483648
        %v450 = vor.u32 1.1754944e-38, %v449
        %v451 = vsel %vm448, %v450, %v446
        %v452 = vmul.f32 1.0, %v451
        %v453 = vrcp.pop %v347
        %v454 = vmul.f32 %v347, %v453
        %v455 = vsub.f32 1.0, %v454
        %v456 = vmul.f32 %v453, %v455
        %v457 = vadd.f32 %v453, %v456
        %vm458 = vweird.f32 %v347
        %vm459 = vweird.f32 %v453
        %vm460 = vmor %vm458, %vm459
        %v461 = vsel %vm460, %v453, %v457
        %v462 = vand.u32 2147483647, %v347
        %vm463 = vcmp.eq.f32.partialorder %v462, 8.507059e+37
        %v464 = vand.u32 %v347, 2147483648
        %v465 = vor.u32 1.1754944e-38, %v464
        %v466 = vsel %vm463, %v465, %v461
        %v467 = vmul.f32 1.0, %v466
        %468 = vst [vmem:[%s271] sm:$0xff] %v362
        %469 = vst [vmem:[%s271 + $0x8] sm:$0xff] %v377
        %470 = vst [vmem:[%s271 + $0x10] sm:$0xff] %v392
        %471 = vst [vmem:[%s271 + $0x18] sm:$0xff] %v407
        %472 = vst [vmem:[%s271 + $0x20] sm:$0xff] %v422
        %473 = vst [vmem:[%s271 + $0x28] sm:$0xff] %v437
        %474 = vst [vmem:[%s271 + $0x30] sm:$0xff] %v452
        %475 = vst [vmem:[%s271 + $0x38] sm:$0xff] %v467
        %s476 = sand.u32 %s109, 1
        %s477 = scalar_lea.sflag [#allocation4], %s476
        %s478 = sand.u32 %s109, 1
        %s479 = smul.addr %s478, 64
        %s480 = scalar_lea.vmem [#allocation8], %s479
        // Predicated region
        $region45: #{_aggregation_pallas_jit.1} parent=31 // pred_check
          %p481 = pneg %p119
        $region46: #{_aggregation_pallas_jit.1} parent=31 // pred_check_branch
          %483 = sbr.rel (%p481) target = $region48
        $region47: #{_aggregation_pallas_jit.1} parent=31 // pred_region
          %s484 = smul.u32 8, %s23
          %486 = vsyncadd %s477, 0
          %s487 = smul.addr %s484, 8
          %s488 = scalar_lea.hbm %s3, %s487
          %s489 = sshll.u32 %s480, 4
          %s490 = int_to_ptr.vmem [resolvable:$true] %s489
          %s491 = sshll.u32 %s488, 4
          %s492 = int_to_ptr.hbm [resolvable:$true] %s491
          %497 = dma.vmem_to_hbm [thread:$0]  %s490, 1024, %s492, %s477, 128, 128, 8
        $region48: #{_aggregation_pallas_jit.1} parent=31 // pred_fallthru
          _
      $region32: #{_aggregation_pallas_jit.1} parent=5 // pred_fallthru
        _
      %p498 = scmp.le.s32.totalorder 2, %s18
      // Predicated region
      $region49: #{_aggregation_pallas_jit.1} parent=5 // pred_check
        %p499 = pneg %p498
      $region50: #{_aggregation_pallas_jit.1} parent=5 // pred_check_branch
        %501 = sbr.rel (%p499) target = $region52
      $region51: #{_aggregation_pallas_jit.1} parent=5 // pred_region
        %s502 = ssub.s32 %s18, 2
        // Predicated region
        $region53: #{_aggregation_pallas_jit.1} parent=51 // pred_check
          %p503 = pneg %p125
        $region54: #{_aggregation_pallas_jit.1} parent=51 // pred_check_branch
          %505 = sbr.rel (%p503) target = $region56
        $region55: #{_aggregation_pallas_jit.1} parent=51 // pred_region
          %s506 = sand.u32 %s110, 1
          %s507 = scalar_lea.sflag [#allocation4], %s506
          %s508 = sand.u32 %s110, 1
          %s509 = smul.addr %s508, 64
          %s510 = scalar_lea.vmem [#allocation8], %s509
          %512 = dma.done %s507, 1024
        $region56: #{_aggregation_pallas_jit.1} parent=51 // pred_fallthru
          _
      $region52: #{_aggregation_pallas_jit.1} parent=5 // pred_fallthru
        _
    $region6: #{_aggregation_pallas_jit.1} parent=1 // loop_footer
      %s22 = sadd.s32 1, %s18
    $region7: #{_aggregation_pallas_jit.1} parent=1 // loop_footer_branch
      %17 = sbr.rel target = $region3
    $region8: #{_aggregation_pallas_jit.1} parent=1 // loop_exit
      _
    %513 = vsyncpa [#allocation3], 1
    %s514 = scalar_lea.sflag [#allocation3], 1
    %515 = vsyncpa %s514, 1
    %516 = vsyncpa [#allocation6], 1
    %s517 = scalar_lea.sflag [#allocation6], 1
    %518 = vsyncpa %s517, 1
    %519 = vsyncpa [#allocation4], 1
    %s520 = scalar_lea.sflag [#allocation4], 1
    %521 = vsyncpa %s520, 1

</llo_original>
